<compile_context>
chip_gen: v7x
topology: tpu7x:2x2x1
jax: 0.10.0
libtpu: 0.0.40
codegen_flags: <defaults>
</compile_context>

<pallas_src>
import functools
import numpy as np

import jax
import jax.numpy as jnp
from jax.experimental import pallas as pl
from jax.experimental.pallas import tpu as pltpu

F32 = jnp.float32


# --------------------------------------------------------------------------- config
def _vmem_limit_bytes():
    """Per-generation scoped-VMEM budget: ~3/4 of physical VMEM, capped at 96 MiB.
    v5e/v6e (128 MiB) -> 96 MiB, v7x (64 MiB) -> 48 MiB."""
    try:
        cap = pltpu.get_tpu_info().vmem_capacity_bytes
        return int(min(96 * 1024 * 1024, cap * 3 // 4))
    except Exception:
        return 32 * 1024 * 1024  # conservative default, safe on all generations


VMEM_LIMIT = _vmem_limit_bytes()
TILE_BUDGET = int(VMEM_LIMIT * 0.7)  # leave headroom for compiler scratch / spills


def _aligned_divisor(dim, align, cap):
    """Largest multiple of `align` that divides `dim` and is <= cap (requires dim % align == 0)."""
    t = max(align, (min(cap, dim) // align) * align)
    while dim % t:
        t -= align
    return t


# --------------------------------------------------------------------------- fused path (x resident in VMEM)
def _fused_se_kernel(inv_l, x_ref, w1t_ref, w2t_ref, o_ref):
    """One image per grid step: pool -> fc1 -> relu -> fc2 -> sigmoid -> scale.
    x_ref/o_ref block: (1, C, L) in the caller's dtype; all math in f32.
    The MLP is done in 'column' orientation (C on sublanes) so no cross
    lane<->sublane relayout is needed anywhere."""
    xf = x_ref[...].astype(jnp.float32)                              # (1, C, L)
    pooled = jnp.sum(xf, axis=2, keepdims=True)[0] * inv_l           # (C, 1) spatial mean
    h = jnp.maximum(
        jnp.dot(w1t_ref[...], pooled, preferred_element_type=jnp.float32), 0.0)   # (midp, 1)
    logits = jnp.dot(w2t_ref[...], h, preferred_element_type=jnp.float32)          # (C, 1)
    scale = jax.nn.sigmoid(logits)                                   # (C, 1)
    o_ref[...] = (xf * scale[None, :, :]).astype(o_ref.dtype)        # lane broadcast


def _fused_fits(C, L, itemsize, midp):
    # dbl-buffered x block + dbl-buffered out block + one f32 working copy + weights.
    need = C * L * (4 * itemsize + 4) + 2 * 2 * C * midp * 4
    return need <= int(TILE_BUDGET * 0.8)


def pallas_se_fused(x3, w1p, w2p):
    """x3: (B, C, L) native dtype.  Returns (B, C, L) in the same dtype."""
    B, C, L = x3.shape
    midp = w1p.shape[1]
    w1t = jnp.swapaxes(w1p, 0, 1)    # (midp, C)  tiny, trace-time transpose
    w2t = jnp.swapaxes(w2p, 0, 1)    # (C, midp)
    return pl.pallas_call(
        functools.partial(_fused_se_kernel, 1.0 / L),
        grid=(B,),
        in_specs=[pl.BlockSpec((1, C, L), lambda b: (b, 0, 0)),
                  pl.BlockSpec((midp, C), lambda b: (0, 0)),
                  pl.BlockSpec((C, midp), lambda b: (0, 0))],
        out_specs=pl.BlockSpec((1, C, L), lambda b: (b, 0, 0)),
        out_shape=jax.ShapeDtypeStruct((B, C, L), x3.dtype),
        compiler_params=pltpu.CompilerParams(
            dimension_semantics=("parallel",),          # per-image, megacore-friendly
            vmem_limit_bytes=VMEM_LIMIT),
    )(x3, w1t, w2t)


# --------------------------------------------------------------------------- large-activation path: pool+MLP kernel
def _pool_fc_kernel(inv_l, true_l, tl, needs_mask,
                    x_ref, w1_ref, w2_ref, scale_ref, acc_ref):
    """Grid (B, L-tiles): tiled spatial sum over the lane (H*W) axis with the SE
    MLP fused into the finalize step.  x block (1, C, tl); acc scratch (1, C, <=128)."""
    l = pl.program_id(1)

    @pl.when(l == 0)
    def _():
        acc_ref[...] = jnp.zeros_like(acc_ref)

    x = x_ref[...].astype(jnp.float32)                               # (1, C, tl)
    if needs_mask:                                                   # cdiv tail tile
        lane = jax.lax.broadcasted_iota(jnp.int32, x.shape, 2) + l * tl
        x = jnp.where(lane < true_l, x, 0.0)
    if tl > 128:
        # chunked VPU adds into a 128-lane accumulator (no per-step XLU reduce)
        s = x[:, :, 0:128]
        for j in range(1, tl // 128):
            s = s + x[:, :, j * 128:(j + 1) * 128]
    else:
        s = x
    acc_ref[...] += s

    @pl.when(l == pl.num_programs(1) - 1)
    def _():
        pooled = jnp.sum(acc_ref[...], axis=2) * inv_l               # (1, C) spatial mean
        h = jnp.maximum(
            jnp.dot(pooled, w1_ref[...], preferred_element_type=jnp.float32), 0.0)
        logits = jnp.dot(h, w2_ref[...], preferred_element_type=jnp.float32)
        scale_ref[...] = jax.nn.sigmoid(logits)[:, None, :]          # (1, 1, C)


def _pool_lane_tile(C, L, itemsize, midp):
    """Lane-tile for the pool kernel, derived from the per-generation VMEM budget."""
    budget = TILE_BUDGET
    # TODO(synk): single-buffer the weight BlockSpecs (pl.Buffered(1)) once validated.
    budget -= 2 * 2 * C * midp * 4          # double-buffered f32 weights
    budget -= C * 128 * 4                   # accumulator scratch
    cap = max(128, budget // (2 * C * max(1, itemsize)))   # double-buffered x block
    cap = min(cap, 2048)
    if L <= 128:
        return L                            # full-extent lane dim (always legal)
    if L % 128 == 0:
        return _aligned_divisor(L, 128, cap)
    return min((cap // 128) * 128, (L // 128) * 128)       # tail handled by in-kernel mask


def pallas_pool_fc(x3, w1p, w2p):
    """x3: (B, C, L) native dtype.  Returns scale (B, C) f32 = sigmoid(MLP(mean(x)))."""
    B, C, L = x3.shape
    midp = w1p.shape[1]
    itemsize = jnp.dtype(x3.dtype).itemsize
    tl = _pool_lane_tile(C, L, itemsize, midp)
    needs_mask = (L % tl) != 0
    acc_lanes = 128 if tl >= 128 else tl
    scale = pl.pallas_call(
        functools.partial(_pool_fc_kernel, 1.0 / L, L, tl, needs_mask),
        grid=(B, pl.cdiv(L, tl)),
        in_specs=[pl.BlockSpec((1, C, tl), lambda b, l: (b, 0, l)),
                  pl.BlockSpec((C, midp), lambda b, l: (0, 0)),
                  pl.BlockSpec((midp, C), lambda b, l: (0, 0))],
        out_specs=pl.BlockSpec((1, 1, C), lambda b, l: (b, 0, 0)),
        out_shape=jax.ShapeDtypeStruct((B, 1, C), F32),
        scratch_shapes=[pltpu.VMEM((1, C, acc_lanes), F32)],
        compiler_params=pltpu.CompilerParams(
            dimension_semantics=("parallel", "arbitrary"),   # reduction axis last
            vmem_limit_bytes=VMEM_LIMIT),
    )(x3, w1p.astype(F32), w2p.astype(F32))
    return scale.reshape(B, C)


# --------------------------------------------------------------------------- large-activation path: scale-multiply kernel
def _scale_mul_kernel(x_ref, s_ref, o_ref):
    # (tr, tl) * (tr, 1); accumulate/compute in f32, store in the input dtype.
    o_ref[...] = (x_ref[...].astype(jnp.float32) * s_ref[...]).astype(o_ref.dtype)


def _mul_tiles(R, L, itemsize):
    if L % 128 == 0:
        tl = _aligned_divisor(L, 128, 2048)
    else:
        tl = L  # full-extent lane dim (legal: equals the array dim; tail vreg masked)
    per_row = 2 * 2 * tl * max(1, itemsize) + 2 * 4   # dbl-buffered in+out blocks + scale col
    cap_r = max(8, TILE_BUDGET // per_row)
    if R % 8 == 0:
        tr = _aligned_divisor(R, 8, min(cap_r, 1024))
    else:
        tr = R  # TODO(synk): mask/pad the row tail when B*C is not a multiple of 8.
    return tr, tl


def pallas_scale_multiply(x2, s2):
    """x2: (R, L) = (B*C, H*W) native dtype, s2: (R, 1) f32.  out = x2 * s2 (lane broadcast)."""
    R, L = x2.shape
    tr, tl = _mul_tiles(R, L, jnp.dtype(x2.dtype).itemsize)
    return pl.pallas_call(
        _scale_mul_kernel,
        grid=(pl.cdiv(R, tr), pl.cdiv(L, tl)),
        in_specs=[pl.BlockSpec((tr, tl), lambda r, l: (r, l)),
                  pl.BlockSpec((tr, 1), lambda r, l: (r, 0))],
        out_specs=pl.BlockSpec((tr, tl), lambda r, l: (r, l)),
        out_shape=jax.ShapeDtypeStruct((R, L), x2.dtype),
        compiler_params=pltpu.CompilerParams(
            dimension_semantics=("parallel", "parallel"),
            vmem_limit_bytes=VMEM_LIMIT),
    )(x2, s2.astype(F32))


# --------------------------------------------------------------------------- module
def init_se_params(key, channel, reduction=16):
    """PyTorch nn.Linear(bias=False) default init, stored as (in, out) for x @ W."""
    mid = max(channel // reduction, 32)
    k1, k2 = jax.random.split(key)
    b1 = 1.0 / np.sqrt(channel)
    b2 = 1.0 / np.sqrt(mid)
    w1 = jax.random.uniform(k1, (channel, mid), F32, -b1, b1)    # fc1
    w2 = jax.random.uniform(k2, (mid, channel), F32, -b2, b2)    # fc2
    return w1, w2


def pad_se_weights(w1, w2, align=128):
    """Zero-pad the hidden dim to a multiple of 128 lanes (exact: relu(0)=0 and
    the padded W2 rows are zero, so the output is unchanged)."""
    mid = w1.shape[1]
    midp = ((mid + align - 1) // align) * align
    if midp == mid:
        return w1, w2
    return (jnp.pad(w1, ((0, 0), (0, midp - mid))),
            jnp.pad(w2, ((0, midp - mid), (0, 0))))


def se_layer_forward(x, w1p, w2p, force_unfused=False):
    """SELayer.forward — x: (B, C, H, W) NCHW, any float dtype; returns same shape/dtype."""
    B, C, H, W = x.shape
    L = H * W
    midp = w1p.shape[1]
    x3 = x.reshape(B, C, L)                               # contiguous reshape, no copy
    if (not force_unfused) and _fused_fits(C, L, jnp.dtype(x.dtype).itemsize, midp):
        out3 = pallas_se_fused(x3, w1p, w2p)              # single HBM read + write of x
    else:
        scale = pallas_pool_fc(x3, w1p, w2p)              # (B, C) f32
        out3 = pallas_scale_multiply(
            x3.reshape(B * C, L), scale.reshape(B * C, 1)).reshape(B, C, L)
    return out3.reshape(B, C, H, W)


# --------------------------------------------------------------------------- main
if __name__ == "__main__":
    key = jax.random.PRNGKey(0)
    kx, kp = jax.random.split(key)

    B, C, H, W = 2, 256, 16, 16
    x = jax.random.normal(kx, (B, C, H, W), F32)
    w1, w2 = init_se_params(kp, C, reduction=16)          # mid = max(256//16, 32) = 32
    w1p, w2p = pad_se_weights(w1, w2)

    def ref_fwd(xx, a, b):                                # pure-JAX SELayer reference
        pooled = jnp.mean(xx.astype(F32), axis=(2, 3))
        y = jax.nn.sigmoid(jnp.maximum(pooled @ a, 0.0) @ b)
        return xx.astype(F32) * y[:, :, None, None]

    fwd = jax.jit(se_layer_forward, static_argnames=("force_unfused",))

    # 1) fused single-kernel path (small activation, f32)
    out = jax.block_until_ready(fwd(x, w1p, w2p))
    ref = ref_fwd(x, w1, w2)
    assert out.shape == x.shape and out.dtype == x.dtype
    assert bool(jnp.all(jnp.isfinite(out)))
    assert bool(jnp.allclose(out, ref, atol=1e-5, rtol=1e-5)), \
        float(jnp.max(jnp.abs(out - ref)))

    # 2) large-activation 2-kernel path (forced), f32, 128-aligned L
    out2 = jax.block_until_ready(fwd(x, w1p, w2p, force_unfused=True))
    assert bool(jnp.allclose(out2, ref, atol=1e-5, rtol=1e-5)), \
        float(jnp.max(jnp.abs(out2 - ref)))

    # 3) bf16 I/O with f32 in-kernel accumulation (fused path)
    xb = x.astype(jnp.bfloat16)
    outb = jax.block_until_ready(fwd(xb, w1p, w2p))
    assert outb.dtype == jnp.bfloat16
    refb = ref_fwd(xb, w1, w2)
    assert bool(jnp.allclose(outb.astype(F32), refb, atol=3e-2, rtol=3e-2)), \
        float(jnp.max(jnp.abs(outb.astype(F32) - refb)))

    # 4) 2-kernel path with a non-128-multiple spatial size (masked tail tile)
    Hs, Ws, Cs = 20, 20, 64                               # L = 400 (not a multiple of 128)
    xs = jax.random.normal(kx, (2, Cs, Hs, Ws), F32)
    w1s, w2s = init_se_params(kp, Cs, reduction=16)       # mid = 32
    w1sp, w2sp = pad_se_weights(w1s, w2s)
    outs = jax.block_until_ready(fwd(xs, w1sp, w2sp, force_unfused=True))
    refs = ref_fwd(xs, w1s, w2s)
    assert bool(jnp.allclose(outs, refs, atol=1e-5, rtol=1e-5)), \
        float(jnp.max(jnp.abs(outs - refs)))

    print("KERNEL_OK")
</pallas_src>

<mosaic_0001>
module attributes {stable_mosaic.version = 11 : i64} {
  func.func @_fused_se_kernel(%arg0: i32, %arg1: memref<1x256x256xf32, #tpu.memory_space<vmem>>, %arg2: memref<128x256xf32, #tpu.memory_space<vmem>>, %arg3: memref<256x128xf32, #tpu.memory_space<vmem>>, %arg4: memref<1x256x256xf32, #tpu.memory_space<vmem>>) attributes {dimension_semantics = [#tpu.dimension_semantics<parallel>], iteration_bounds = array<i64: 2>, scalar_prefetch = 0 : i64, scratch_operands = 0 : i64, tpu.core_type = #tpu.core_type<tc>, window_params = [{transform_indices = @transform_0, window_bounds = array<i64: 1, 256, 256>}, {pipeline_mode = #tpu.pipeline_mode<synchronous>, transform_indices = @transform_1, window_bounds = array<i64: 128, 256>}, {pipeline_mode = #tpu.pipeline_mode<synchronous>, transform_indices = @transform_2, window_bounds = array<i64: 256, 128>}, {transform_indices = @transform_3, window_bounds = array<i64: 1, 256, 256>}]} {
    %c0 = arith.constant 0 : index
    %c0_0 = arith.constant 0 : index
    %c0_1 = arith.constant 0 : index
    %0 = vector.load %arg1[%c0, %c0_0, %c0_1] : memref<1x256x256xf32, #tpu.memory_space<vmem>>, vector<1x256x256xf32>
    %cst = arith.constant dense<0.000000e+00> : vector<1x256xf32>
    %1 = vector.multi_reduction <add>, %0, %cst [2] : vector<1x256x256xf32> to vector<1x256xf32>
    %2 = vector.shape_cast %1 : vector<1x256xf32> to vector<1x256x1xf32>
    %3 = vector.shape_cast %2 : vector<1x256x1xf32> to vector<256x1xf32>
    %cst_2 = arith.constant 3.906250e-03 : f32
    %4 = vector.broadcast %cst_2 : f32 to vector<256x1xf32>
    %5 = arith.mulf %3, %4 : vector<256x1xf32>
    %c0_3 = arith.constant 0 : index
    %c0_4 = arith.constant 0 : index
    %6 = vector.load %arg2[%c0_3, %c0_4] : memref<128x256xf32, #tpu.memory_space<vmem>>, vector<128x256xf32>
    %cst_5 = arith.constant dense<0.000000e+00> : vector<128x1xf32>
    %7 = tpu.matmul %6, %5, %cst_5 {dimension_numbers = #tpu.dot_dimension_numbers<[1], [0], [0], [1], [0, 0, 1, 1], [], []>} : vector<128x256xf32>, vector<256x1xf32>, vector<128x1xf32> -> vector<128x1xf32>
    %cst_6 = arith.constant 0.000000e+00 : f32
    %8 = vector.broadcast %cst_6 : f32 to vector<128x1xf32>
    %9 = arith.maximumf %7, %8 : vector<128x1xf32>
    %c0_7 = arith.constant 0 : index
    %c0_8 = arith.constant 0 : index
    %10 = vector.load %arg3[%c0_7, %c0_8] : memref<256x128xf32, #tpu.memory_space<vmem>>, vector<256x128xf32>
    %cst_9 = arith.constant dense<0.000000e+00> : vector<256x1xf32>
    %11 = tpu.matmul %10, %9, %cst_9 {dimension_numbers = #tpu.dot_dimension_numbers<[1], [0], [0], [1], [0, 0, 1, 1], [], []>} : vector<256x128xf32>, vector<128x1xf32>, vector<256x1xf32> -> vector<256x1xf32>
    %12 = arith.negf %11 : vector<256x1xf32>
    %13 = math.exp %12 : vector<256x1xf32>
    %cst_10 = arith.constant 1.000000e+00 : f32
    %14 = vector.broadcast %cst_10 : f32 to vector<256x1xf32>
    %15 = arith.addf %14, %13 : vector<256x1xf32>
    %16 = arith.divf %14, %15 : vector<256x1xf32>
    %17 = vector.shape_cast %16 : vector<256x1xf32> to vector<1x256x1xf32>
    %18 = vector.broadcast %17 : vector<1x256x1xf32> to vector<1x256x256xf32>
    %19 = arith.mulf %0, %18 : vector<1x256x256xf32>
    %c0_11 = arith.constant 0 : index
    %c0_12 = arith.constant 0 : index
    %c0_13 = arith.constant 0 : index
    %20 = vector.load %arg4[%c0_11, %c0_12, %c0_13] : memref<1x256x256xf32, #tpu.memory_space<vmem>>, vector<1x256x256xf32>
    tpu.vector_store %arg4[%c0_11, %c0_12, %c0_13], %19 {strides = array<i32>} : memref<1x256x256xf32, #tpu.memory_space<vmem>>, vector<1x256x256xf32>,
    return
  }
  func.func @transform_0(%arg0: i32) -> (i32, i32, i32) {
    %c0_i32 = arith.constant 0 : i32
    %c0_i32_0 = arith.constant 0 : i32
    %c0_i32_1 = arith.constant 0 : i32
    return %arg0, %c0_i32, %c0_i32_0 : i32, i32, i32
  }
  func.func @transform_1(%arg0: i32) -> (i32, i32) {
    %c0_i32 = arith.constant 0 : i32
    %c0_i32_0 = arith.constant 0 : i32
    %c0_i32_1 = arith.constant 0 : i32
    return %c0_i32, %c0_i32_0 : i32, i32
  }
  func.func @transform_2(%arg0: i32) -> (i32, i32) {
    %c0_i32 = arith.constant 0 : i32
    %c0_i32_0 = arith.constant 0 : i32
    %c0_i32_1 = arith.constant 0 : i32
    return %c0_i32, %c0_i32_0 : i32, i32
  }
  func.func @transform_3(%arg0: i32) -> (i32, i32, i32) {
    %c0_i32 = arith.constant 0 : i32
    %c0_i32_0 = arith.constant 0 : i32
    %c0_i32_1 = arith.constant 0 : i32
    return %arg0, %c0_i32, %c0_i32_0 : i32, i32, i32
  }
}

</mosaic_0001>

<llo_original>
// kernel: se_layer_forward.1
$region0: #{se_layer_forward.1}
  #allocation0 [shape = 'u32[]', space=smem, size = 0x4, offset = 0x4, fixed_abs, tag = 'smem constant byte address 0x4 - core index']
  #allocation1 [shape = 'u32[144,128]{1,0:T(1,128)}', space=vmem, size = 0x12000, scoped, tag = 'internal scratch']
  %s0 = inlined_call_operand.vmem [shape: f32[2,256,256], index: 0, kind: input, shape index: {}]
  %s1 = inlined_call_operand.vmem [shape: f32[128,256], index: 1, kind: input, shape index: {}]
  %s2 = inlined_call_operand.vmem [shape: f32[256,128], index: 2, kind: input, shape index: {}]
  %s3 = inlined_call_operand.vmem [shape: f32[2,256,256], index: 3, kind: output, shape index: {}]
  %s4 = sld [smem:[#allocation0]]
  $region45: #{se_layer_forward.1} parent=0
    _
  %s6 = ssub.s32 1, %s4
  %s7 = scalar_select 0, %s6, %s4
  loop: start=0, step=1, limit=4
  $region2: #{se_layer_forward.1} parent=0 // loop_pre_header
    _
  $region3: #{se_layer_forward.1} parent=0 // loop_header
    %s9 = sphi 0, %s13
    %p10 = scmp.ge.s32.totalorder %s9, 4
    %s19 = sphi 0, %s21
    %s22 = sphi 0, %s19
    %s23 = sphi 0, %s22
    %s39 = sphi 0, %s23
    %s43 = sphi 0, %s43
    %s45 = sphi 0, %s43
    %s46 = sphi 0, %s45
    %s60 = sphi 0, %s46
    %s64 = sphi 0, %s64
    %s66 = sphi 0, %s64
    %s67 = sphi 0, %s66
    %s81 = sphi 0, %s67
    %s87 = sphi 0, %s89
    %s90 = sphi 0, %s87
    %s91 = sphi 0, %s90
    %s107 = sphi 0, %s91
  $region4: #{se_layer_forward.1} parent=0 // loop_header_branch
    %12 = sbr.rel (%p10) target = $region8
  $region5: #{se_layer_forward.1} parent=0 // loop_body
    %s14 = ssub.s32 %s9, 1
    %s15 = ssub.s32 %s9, 2
    %s16 = sadd.s32 %s9, 1
    %s17 = ssub.s32 %s9, %s16
    %p18 = scmp.eq.s32.totalorder %s17, 0
    %s20 = sadd.s32 %s19, 1
    %s21 = scalar_select %p18, %s19, %s20
    %p24 = pneg %p18
    %p25 = scmp.eq.s32.totalorder %s9, 1
    %p26 = por %p24, %p25
    %p27 = scmp.ne.s32.totalorder %s19, %s22
    %p28 = scmp.eq.s32.totalorder %s9, 0
    %p29 = por %p27, %p28
    %p30 = scmp.ne.s32.totalorder %s19, %s22
    %p31 = scmp.eq.s32.totalorder %s14, 1
    %p32 = por %p30, %p31
    %p33 = scmp.ne.s32.totalorder %s22, %s23
    %p34 = scmp.eq.s32.totalorder %s14, 0
    %p35 = por %p33, %p34
    %p36 = scmp.ne.s32.totalorder %s22, %s23
    %p37 = scmp.eq.s32.totalorder %s15, 1
    %p38 = por %p36, %p37
    %p40 = scmp.ne.s32.totalorder %s23, %s39
    %p41 = scmp.eq.s32.totalorder %s15, 0
    %p42 = por %p40, %p41
    %s44 = sadd.s32 %s43, 1
    %p47 = scmp.eq.s32.totalorder %s9, 1
    %p48 = scmp.ne.s32.totalorder %s43, %s45
    %p49 = scmp.eq.s32.totalorder %s9, 0
    %p50 = por %p48, %p49
    %p51 = scmp.ne.s32.totalorder %s43, %s45
    %p52 = scmp.eq.s32.totalorder %s14, 1
    %p53 = por %p51, %p52
    %p54 = scmp.ne.s32.totalorder %s45, %s46
    %p55 = scmp.eq.s32.totalorder %s14, 0
    %p56 = por %p54, %p55
    %p57 = scmp.ne.s32.totalorder %s45, %s46
    %p58 = scmp.eq.s32.totalorder %s15, 1
    %p59 = por %p57, %p58
    %p61 = scmp.ne.s32.totalorder %s46, %s60
    %p62 = scmp.eq.s32.totalorder %s15, 0
    %p63 = por %p61, %p62
    %s65 = sadd.s32 %s64, 1
    %p68 = scmp.eq.s32.totalorder %s9, 1
    %p69 = scmp.ne.s32.totalorder %s64, %s66
    %p70 = scmp.eq.s32.totalorder %s9, 0
    %p71 = por %p69, %p70
    %p72 = scmp.ne.s32.totalorder %s64, %s66
    %p73 = scmp.eq.s32.totalorder %s14, 1
    %p74 = por %p72, %p73
    %p75 = scmp.ne.s32.totalorder %s66, %s67
    %p76 = scmp.eq.s32.totalorder %s14, 0
    %p77 = por %p75, %p76
    %p78 = scmp.ne.s32.totalorder %s66, %s67
    %p79 = scmp.eq.s32.totalorder %s15, 1
    %p80 = por %p78, %p79
    %p82 = scmp.ne.s32.totalorder %s67, %s81
    %p83 = scmp.eq.s32.totalorder %s15, 0
    %p84 = por %p82, %p83
    %s85 = ssub.s32 %s9, %s16
    %p86 = scmp.eq.s32.totalorder %s85, 0
    %s88 = sadd.s32 %s87, 1
    %s89 = scalar_select %p86, %s87, %s88
    %p92 = pneg %p86
    %p93 = scmp.eq.s32.totalorder %s9, 1
    %p94 = por %p92, %p93
    %p95 = scmp.ne.s32.totalorder %s87, %s90
    %p96 = scmp.eq.s32.totalorder %s9, 0
    %p97 = por %p95, %p96
    %p98 = scmp.ne.s32.totalorder %s87, %s90
    %p99 = scmp.eq.s32.totalorder %s14, 1
    %p100 = por %p98, %p99
    %p101 = scmp.ne.s32.totalorder %s90, %s91
    %p102 = scmp.eq.s32.totalorder %s14, 0
    %p103 = por %p101, %p102
    %p104 = scmp.ne.s32.totalorder %s90, %s91
    %p105 = scmp.eq.s32.totalorder %s15, 1
    %p106 = por %p104, %p105
    %p108 = scmp.ne.s32.totalorder %s91, %s107
    %p109 = scmp.eq.s32.totalorder %s15, 0
    %p110 = por %p108, %p109
    %p111 = scmp.le.s32.totalorder 1, %s9
    %p112 = scmp.lt.s32.totalorder %s9, 3
    %p113 = pnand %p111, %p112
    %p114 = pneg %p113
    // Predicated region
    $region9: #{se_layer_forward.1} parent=5 // pred_check
      _
    $region10: #{se_layer_forward.1} parent=5 // pred_check_branch
      %116 = sbr.rel (%p113) target = $region12
    $region11: #{se_layer_forward.1} parent=5 // pred_region
      %s117 = ssub.s32 %s9, 1
      // Predicated region
      $region13: #{se_layer_forward.1} parent=11 // pred_check
        %p118 = pneg %p56
      $region14: #{se_layer_forward.1} parent=11 // pred_check_branch
        %120 = sbr.rel (%p118) target = $region16
      $region15: #{se_layer_forward.1} parent=11 // pred_region
        _
      $region16: #{se_layer_forward.1} parent=11 // pred_fallthru
        _
      // Predicated region
      $region17: #{se_layer_forward.1} parent=11 // pred_check
        %p121 = pneg %p77
      $region18: #{se_layer_forward.1} parent=11 // pred_check_branch
        %123 = sbr.rel (%p121) target = $region20
      $region19: #{se_layer_forward.1} parent=11 // pred_region
        _
      $region20: #{se_layer_forward.1} parent=11 // pred_fallthru
        _
    $region12: #{se_layer_forward.1} parent=5 // pred_fallthru
      _
    %p124 = scmp.lt.s32.totalorder %s9, 2
    // Predicated region
    $region21: #{se_layer_forward.1} parent=5 // pred_check
      %p125 = pneg %p124
    $region22: #{se_layer_forward.1} parent=5 // pred_check_branch
      %127 = sbr.rel (%p125) target = $region24
    $region23: #{se_layer_forward.1} parent=5 // pred_region
      // Predicated region
      $region25: #{se_layer_forward.1} parent=23 // pred_check
        %p128 = pneg %p29
      $region26: #{se_layer_forward.1} parent=23 // pred_check_branch
        %130 = sbr.rel (%p128) target = $region28
      $region27: #{se_layer_forward.1} parent=23 // pred_region
        %p131 = scmp.lt.s32.totalorder %s9, 1
        %s132 = scalar_select %p131, %s9, 1
        %s133 = smul.addr %s132, 64
        %s134 = smul.addr %s133, 8
        %s135 = scalar_lea.vmem %s0, %s134
      $region28: #{se_layer_forward.1} parent=23 // pred_fallthru
        _
    $region24: #{se_layer_forward.1} parent=5 // pred_fallthru
      _
    %p136 = scmp.le.s32.totalorder 1, %s9
    %p137 = scmp.lt.s32.totalorder %s9, 3
    %p138 = pnand %p136, %p137
    %p139 = pneg %p138
    // Predicated region
    $region29: #{se_layer_forward.1} parent=5 // pred_check
      _
    $region30: #{se_layer_forward.1} parent=5 // pred_check_branch
      %141 = sbr.rel (%p138) target = $region32
    $region31: #{se_layer_forward.1} parent=5 // pred_region
      %s142 = ssub.s32 %s9, 1
      %p143 = scmp.lt.s32.totalorder %s14, 1
      %s144 = scalar_select %p143, %s14, 1
      %s145 = smul.addr %s144, 64
      %s146 = smul.addr %s145, 8
      %s147 = scalar_lea.vmem %s0, %s146
      %p148 = pneg %p35
      %p149 = pneg %p32
      %p150 = pneg %p56
      %p151 = pneg %p53
      %p152 = pneg %p77
      %p153 = pneg %p74
      %p154 = pneg %p103
      %p155 = pneg %p100
      %p156 = scmp.lt.s32.totalorder %s14, 1
      %s157 = scalar_select %p156, %s14, 1
      %s158 = smul.addr %s157, 64
      %s159 = smul.addr %s158, 8
      %s160 = scalar_lea.vmem %s3, %s159
      %p161 = scmp.lt.s32.totalorder %s14, 1
      %s162 = scalar_select %p161, %s14, 1
      %s163 = smul.addr %s162, 64
      %s164 = smul.addr %s163, 8
      %s165 = scalar_lea.vmem %s0, %s164
      %p166 = scmp.lt.s32.totalorder %s14, 1
      %s167 = scalar_select %p166, %s14, 1
      %s168 = smul.addr %s167, 64
      %s169 = smul.addr %s168, 8
      %s170 = scalar_lea.vmem %s3, %s169
      %v171 = vld [vmem:[%s165] sm:$0xff]
      %v172 = vld [vmem:[%s165 + $0x8] sm:$0xff]
      %v173 = vld [vmem:[%s165 + $0x10] sm:$0xff]
      %v174 = vld [vmem:[%s165 + $0x18] sm:$0xff]
      %v175 = vld [vmem:[%s165 + $0x20] sm:$0xff]
      %v176 = vld [vmem:[%s165 + $0x28] sm:$0xff]
      %v177 = vld [vmem:[%s165 + $0x30] sm:$0xff]
      %v178 = vld [vmem:[%s165 + $0x38] sm:$0xff]
      %v179 = vld [vmem:[%s165 + $0x40] sm:$0xff]
      %v180 = vld [vmem:[%s165 + $0x48] sm:$0xff]
      %v181 = vld [vmem:[%s165 + $0x50] sm:$0xff]
      %v182 = vld [vmem:[%s165 + $0x58] sm:$0xff]
      %v183 = vld [vmem:[%s165 + $0x60] sm:$0xff]
      %v184 = vld [vmem:[%s165 + $0x68] sm:$0xff]
      %v185 = vld [vmem:[%s165 + $0x70] sm:$0xff]
      %v186 = vld [vmem:[%s165 + $0x78] sm:$0xff]
      %v187 = vld [vmem:[%s165 + $0x80] sm:$0xff]
      %v188 = vld [vmem:[%s165 + $0x88] sm:$0xff]
      %v189 = vld [vmem:[%s165 + $0x90] sm:$0xff]
      %v190 = vld [vmem:[%s165 + $0x98] sm:$0xff]
      %v191 = vld [vmem:[%s165 + $0xa0] sm:$0xff]
      %v192 = vld [vmem:[%s165 + $0xa8] sm:$0xff]
      %v193 = vld [vmem:[%s165 + $0xb0] sm:$0xff]
      %v194 = vld [vmem:[%s165 + $0xb8] sm:$0xff]
      %v195 = vld [vmem:[%s165 + $0xc0] sm:$0xff]
      %v196 = vld [vmem:[%s165 + $0xc8] sm:$0xff]
      %v197 = vld [vmem:[%s165 + $0xd0] sm:$0xff]
      %v198 = vld [vmem:[%s165 + $0xd8] sm:$0xff]
      %v199 = vld [vmem:[%s165 + $0xe0] sm:$0xff]
      %v200 = vld [vmem:[%s165 + $0xe8] sm:$0xff]
      %v201 = vld [vmem:[%s165 + $0xf0] sm:$0xff]
      %v202 = vld [vmem:[%s165 + $0xf8] sm:$0xff]
      %v203 = vld [vmem:[%s165 + $0x100] sm:$0xff]
      %v204 = vld [vmem:[%s165 + $0x108] sm:$0xff]
      %v205 = vld [vmem:[%s165 + $0x110] sm:$0xff]
      %v206 = vld [vmem:[%s165 + $0x118] sm:$0xff]
      %v207 = vld [vmem:[%s165 + $0x120] sm:$0xff]
      %v208 = vld [vmem:[%s165 + $0x128] sm:$0xff]
      %v209 = vld [vmem:[%s165 + $0x130] sm:$0xff]
      %v210 = vld [vmem:[%s165 + $0x138] sm:$0xff]
      %v211 = vld [vmem:[%s165 + $0x140] sm:$0xff]
      %v212 = vld [vmem:[%s165 + $0x148] sm:$0xff]
      %v213 = vld [vmem:[%s165 + $0x150] sm:$0xff]
      %v214 = vld [vmem:[%s165 + $0x158] sm:$0xff]
      %v215 = vld [vmem:[%s165 + $0x160] sm:$0xff]
      %v216 = vld [vmem:[%s165 + $0x168] sm:$0xff]
      %v217 = vld [vmem:[%s165 + $0x170] sm:$0xff]
      %v218 = vld [vmem:[%s165 + $0x178] sm:$0xff]
      %v219 = vld [vmem:[%s165 + $0x180] sm:$0xff]
      %v220 = vld [vmem:[%s165 + $0x188] sm:$0xff]
      %v221 = vld [vmem:[%s165 + $0x190] sm:$0xff]
      %v222 = vld [vmem:[%s165 + $0x198] sm:$0xff]
      %v223 = vld [vmem:[%s165 + $0x1a0] sm:$0xff]
      %v224 = vld [vmem:[%s165 + $0x1a8] sm:$0xff]
      %v225 = vld [vmem:[%s165 + $0x1b0] sm:$0xff]
      %v226 = vld [vmem:[%s165 + $0x1b8] sm:$0xff]
      %v227 = vld [vmem:[%s165 + $0x1c0] sm:$0xff]
      %v228 = vld [vmem:[%s165 + $0x1c8] sm:$0xff]
      %v229 = vld [vmem:[%s165 + $0x1d0] sm:$0xff]
      %v230 = vld [vmem:[%s165 + $0x1d8] sm:$0xff]
      %v231 = vld [vmem:[%s165 + $0x1e0] sm:$0xff]
      %v232 = vld [vmem:[%s165 + $0x1e8] sm:$0xff]
      %v233 = vld [vmem:[%s165 + $0x1f0] sm:$0xff]
      %v234 = vld [vmem:[%s165 + $0x1f8] sm:$0xff]
      %v235 = vadd.f32 %v171, %v172
      %236 = vadd.xlane.f32.xlu0 %v235
      %v237 = vpop.xlane.xlu0 %236
      %v238 = vadd.f32 %v173, %v174
      %239 = vadd.xlane.f32.xlu0 %v238
      %v240 = vpop.xlane.xlu0 %239
      %v241 = vadd.f32 %v175, %v176
      %242 = vadd.xlane.f32.xlu0 %v241
      %v243 = vpop.xlane.xlu0 %242
      %v244 = vadd.f32 %v177, %v178
      %245 = vadd.xlane.f32.xlu0 %v244
      %v246 = vpop.xlane.xlu0 %245
      %v247 = vadd.f32 %v179, %v180
      %248 = vadd.xlane.f32.xlu0 %v247
      %v249 = vpop.xlane.xlu0 %248
      %v250 = vadd.f32 %v181, %v182
      %251 = vadd.xlane.f32.xlu0 %v250
      %v252 = vpop.xlane.xlu0 %251
      %v253 = vadd.f32 %v183, %v184
      %254 = vadd.xlane.f32.xlu0 %v253
      %v255 = vpop.xlane.xlu0 %254
      %v256 = vadd.f32 %v185, %v186
      %257 = vadd.xlane.f32.xlu0 %v256
      %v258 = vpop.xlane.xlu0 %257
      %v259 = vadd.f32 %v187, %v188
      %260 = vadd.xlane.f32.xlu0 %v259
      %v261 = vpop.xlane.xlu0 %260
      %v262 = vadd.f32 %v189, %v190
      %263 = vadd.xlane.f32.xlu0 %v262
      %v264 = vpop.xlane.xlu0 %263
      %v265 = vadd.f32 %v191, %v192
      %266 = vadd.xlane.f32.xlu0 %v265
      %v267 = vpop.xlane.xlu0 %266
      %v268 = vadd.f32 %v193, %v194
      %269 = vadd.xlane.f32.xlu0 %v268
      %v270 = vpop.xlane.xlu0 %269
      %v271 = vadd.f32 %v195, %v196
      %272 = vadd.xlane.f32.xlu0 %v271
      %v273 = vpop.xlane.xlu0 %272
      %v274 = vadd.f32 %v197, %v198
      %275 = vadd.xlane.f32.xlu0 %v274
      %v276 = vpop.xlane.xlu0 %275
      %v277 = vadd.f32 %v199, %v200
      %278 = vadd.xlane.f32.xlu0 %v277
      %v279 = vpop.xlane.xlu0 %278
      %v280 = vadd.f32 %v201, %v202
      %281 = vadd.xlane.f32.xlu0 %v280
      %v282 = vpop.xlane.xlu0 %281
      %v283 = vadd.f32 %v203, %v204
      %284 = vadd.xlane.f32.xlu0 %v283
      %v285 = vpop.xlane.xlu0 %284
      %v286 = vadd.f32 %v205, %v206
      %287 = vadd.xlane.f32.xlu0 %v286
      %v288 = vpop.xlane.xlu0 %287
      %v289 = vadd.f32 %v207, %v208
      %290 = vadd.xlane.f32.xlu0 %v289
      %v291 = vpop.xlane.xlu0 %290
      %v292 = vadd.f32 %v209, %v210
      %293 = vadd.xlane.f32.xlu0 %v292
      %v294 = vpop.xlane.xlu0 %293
      %v295 = vadd.f32 %v211, %v212
      %296 = vadd.xlane.f32.xlu0 %v295
      %v297 = vpop.xlane.xlu0 %296
      %v298 = vadd.f32 %v213, %v214
      %299 = vadd.xlane.f32.xlu0 %v298
      %v300 = vpop.xlane.xlu0 %299
      %v301 = vadd.f32 %v215, %v216
      %302 = vadd.xlane.f32.xlu0 %v301
      %v303 = vpop.xlane.xlu0 %302
      %v304 = vadd.f32 %v217, %v218
      %305 = vadd.xlane.f32.xlu0 %v304
      %v306 = vpop.xlane.xlu0 %305
      %v307 = vadd.f32 %v219, %v220
      %308 = vadd.xlane.f32.xlu0 %v307
      %v309 = vpop.xlane.xlu0 %308
      %v310 = vadd.f32 %v221, %v222
      %311 = vadd.xlane.f32.xlu0 %v310
      %v312 = vpop.xlane.xlu0 %311
      %v313 = vadd.f32 %v223, %v224
      %314 = vadd.xlane.f32.xlu0 %v313
      %v315 = vpop.xlane.xlu0 %314
      %v316 = vadd.f32 %v225, %v226
      %317 = vadd.xlane.f32.xlu0 %v316
      %v318 = vpop.xlane.xlu0 %317
      %v319 = vadd.f32 %v227, %v228
      %320 = vadd.xlane.f32.xlu0 %v319
      %v321 = vpop.xlane.xlu0 %320
      %v322 = vadd.f32 %v229, %v230
      %323 = vadd.xlane.f32.xlu0 %v322
      %v324 = vpop.xlane.xlu0 %323
      %v325 = vadd.f32 %v231, %v232
      %326 = vadd.xlane.f32.xlu0 %v325
      %v327 = vpop.xlane.xlu0 %326
      %v328 = vadd.f32 %v233, %v234
      %329 = vadd.xlane.f32.xlu0 %v328
      %v330 = vpop.xlane.xlu0 %329
      %v331 = vmul.f32 %v237, 0.00390625
      %v332 = vmul.f32 %v240, 0.00390625
      %v333 = vmul.f32 %v243, 0.00390625
      %v334 = vmul.f32 %v246, 0.00390625
      %v335 = vmul.f32 %v249, 0.00390625
      %v336 = vmul.f32 %v252, 0.00390625
      %v337 = vmul.f32 %v255, 0.00390625
      %v338 = vmul.f32 %v258, 0.00390625
      %v339 = vmul.f32 %v261, 0.00390625
      %v340 = vmul.f32 %v264, 0.00390625
      %v341 = vmul.f32 %v267, 0.00390625
      %v342 = vmul.f32 %v270, 0.00390625
      %v343 = vmul.f32 %v273, 0.00390625
      %v344 = vmul.f32 %v276, 0.00390625
      %v345 = vmul.f32 %v279, 0.00390625
      %v346 = vmul.f32 %v282, 0.00390625
      %v347 = vmul.f32 %v285, 0.00390625
      %v348 = vmul.f32 %v288, 0.00390625
      %v349 = vmul.f32 %v291, 0.00390625
      %v350 = vmul.f32 %v294, 0.00390625
      %v351 = vmul.f32 %v297, 0.00390625
      %v352 = vmul.f32 %v300, 0.00390625
      %v353 = vmul.f32 %v303, 0.00390625
      %v354 = vmul.f32 %v306, 0.00390625
      %v355 = vmul.f32 %v309, 0.00390625
      %v356 = vmul.f32 %v312, 0.00390625
      %v357 = vmul.f32 %v315, 0.00390625
      %v358 = vmul.f32 %v318, 0.00390625
      %v359 = vmul.f32 %v321, 0.00390625
      %v360 = vmul.f32 %v324, 0.00390625
      %v361 = vmul.f32 %v327, 0.00390625
      %v362 = vmul.f32 %v330, 0.00390625
      %v363 = vld [vmem:[%s1] sm:$0xff]
      %v364 = vld [vmem:[%s1 + $0x8] sm:$0xff]
      %v365 = vld [vmem:[%s1 + $0x10] sm:$0xff]
      %v366 = vld [vmem:[%s1 + $0x18] sm:$0xff]
      %v367 = vld [vmem:[%s1 + $0x20] sm:$0xff]
      %v368 = vld [vmem:[%s1 + $0x28] sm:$0xff]
      %v369 = vld [vmem:[%s1 + $0x30] sm:$0xff]
      %v370 = vld [vmem:[%s1 + $0x38] sm:$0xff]
      %v371 = vld [vmem:[%s1 + $0x40] sm:$0xff]
      %v372 = vld [vmem:[%s1 + $0x48] sm:$0xff]
      %v373 = vld [vmem:[%s1 + $0x50] sm:$0xff]
      %v374 = vld [vmem:[%s1 + $0x58] sm:$0xff]
      %v375 = vld [vmem:[%s1 + $0x60] sm:$0xff]
      %v376 = vld [vmem:[%s1 + $0x68] sm:$0xff]
      %v377 = vld [vmem:[%s1 + $0x70] sm:$0xff]
      %v378 = vld [vmem:[%s1 + $0x78] sm:$0xff]
      %v379 = vld [vmem:[%s1 + $0x80] sm:$0xff]
      %v380 = vld [vmem:[%s1 + $0x88] sm:$0xff]
      %v381 = vld [vmem:[%s1 + $0x90] sm:$0xff]
      %v382 = vld [vmem:[%s1 + $0x98] sm:$0xff]
      %v383 = vld [vmem:[%s1 + $0xa0] sm:$0xff]
      %v384 = vld [vmem:[%s1 + $0xa8] sm:$0xff]
      %v385 = vld [vmem:[%s1 + $0xb0] sm:$0xff]
      %v386 = vld [vmem:[%s1 + $0xb8] sm:$0xff]
      %v387 = vld [vmem:[%s1 + $0xc0] sm:$0xff]
      %v388 = vld [vmem:[%s1 + $0xc8] sm:$0xff]
      %v389 = vld [vmem:[%s1 + $0xd0] sm:$0xff]
      %v390 = vld [vmem:[%s1 + $0xd8] sm:$0xff]
      %v391 = vld [vmem:[%s1 + $0xe0] sm:$0xff]
      %v392 = vld [vmem:[%s1 + $0xe8] sm:$0xff]
      %v393 = vld [vmem:[%s1 + $0xf0] sm:$0xff]
      %v394 = vld [vmem:[%s1 + $0xf8] sm:$0xff]
      %395 = vmatprep.subr.mxu0 0.0
      %396 = vmatpush1.msra.mxu0 %v331
      %397 = vmatprep.subr.mxu0 0.0
      %398 = vmatpush1.msra.mxu0 %v332
      %399 = vmatprep.subr.mxu0 0.0
      %400 = vmatpush1.msra.mxu0 %v333
      %401 = vmatprep.subr.mxu0 0.0
      %402 = vmatpush1.msra.mxu0 %v334
      %403 = vmatprep.subr.mxu0 0.0
      %404 = vmatpush1.msra.mxu0 %v335
      %405 = vmatprep.subr.mxu0 0.0
      %406 = vmatpush1.msra.mxu0 %v336
      %407 = vmatprep.subr.mxu0 0.0
      %408 = vmatpush1.msra.mxu0 %v337
      %409 = vmatprep.subr.mxu0 0.0
      %410 = vmatpush1.msra.mxu0 %v338
      %411 = vmatprep.subr.mxu0 0.0
      %412 = vmatpush1.msra.mxu0 %v339
      %413 = vmatprep.subr.mxu0 0.0
      %414 = vmatpush1.msra.mxu0 %v340
      %415 = vmatprep.subr.mxu0 0.0
      %416 = vmatpush1.msra.mxu0 %v341
      %417 = vmatprep.subr.mxu0 0.0
      %418 = vmatpush1.msra.mxu0 %v342
      %419 = vmatprep.subr.mxu0 0.0
      %420 = vmatpush1.msra.mxu0 %v343
      %421 = vmatprep.subr.mxu0 0.0
      %422 = vmatpush1.msra.mxu0 %v344
      %423 = vmatprep.subr.mxu0 0.0
      %424 = vmatpush1.msra.mxu0 %v345
      %425 = vmatprep.subr.mxu0 0.0
      %426 = vmatpush1.msra.mxu0 %v346
      %427 = vmatprep.subr.mxu0 0.0
      %428 = vmatpush1.msra.mxu0 %v347
      %429 = vmatprep.subr.mxu0 0.0
      %430 = vmatpush1.msra.mxu0 %v348
      %431 = vmatprep.subr.mxu0 0.0
      %432 = vmatpush1.msra.mxu0 %v349
      %433 = vmatprep.subr.mxu0 0.0
      %434 = vmatpush1.msra.mxu0 %v350
      %435 = vmatprep.subr.mxu0 0.0
      %436 = vmatpush1.msra.mxu0 %v351
      %437 = vmatprep.subr.mxu0 0.0
      %438 = vmatpush1.msra.mxu0 %v352
      %439 = vmatprep.subr.mxu0 0.0
      %440 = vmatpush1.msra.mxu0 %v353
      %441 = vmatprep.subr.mxu0 0.0
      %442 = vmatpush1.msra.mxu0 %v354
      %443 = vmatprep.subr.mxu0 0.0
      %444 = vmatpush1.msra.mxu0 %v355
      %445 = vmatprep.subr.mxu0 0.0
      %446 = vmatpush1.msra.mxu0 %v356
      %447 = vmatprep.subr.mxu0 0.0
      %448 = vmatpush1.msra.mxu0 %v357
      %449 = vmatprep.subr.mxu0 0.0
      %450 = vmatpush1.msra.mxu0 %v358
      %451 = vmatprep.subr.mxu0 0.0
      %452 = vmatpush1.msra.mxu0 %v359
      %453 = vmatprep.subr.mxu0 0.0
      %454 = vmatpush1.msra.mxu0 %v360
      %455 = vmatprep.subr.mxu0 0.0
      %456 = vmatpush1.msra.mxu0 %v361
      %457 = vmatprep.subr.mxu0 0.0
      %458 = vmatpush1.msra.mxu0 %v362
      %459 = vmatprep.mubr.f32.mxu0 %v364
      %460 = vmatmul.mubr.f32.gmra.mrb[0].mxu0 %v363
      %v461 = vpop.f32.mrb[0].mxu0
      %v462 = vadd.f32 0.0, %v461
      %v463 = vpop.f32.mrb[0].mxu0
      %464 = vmatprep.mubr.f32.mxu0 %v366
      %465 = vmatmul.mubr.f32.gmra.mrb[0].mxu0 %v365
      %v466 = vpop.f32.mrb[0].mxu0
      %v467 = vadd.f32 0.0, %v466
      %v468 = vpop.f32.mrb[0].mxu0
      %469 = vmatprep.mubr.f32.mxu0 %v368
      %470 = vmatmul.mubr.f32.gmra.mrb[0].mxu0 %v367
      %v471 = vpop.f32.mrb[0].mxu0
      %v472 = vadd.f32 0.0, %v471
      %v473 = vpop.f32.mrb[0].mxu0
      %474 = vmatprep.mubr.f32.mxu0 %v370
      %475 = vmatmul.mubr.f32.gmra.mrb[0].mxu0 %v369
      %v476 = vpop.f32.mrb[0].mxu0
      %v477 = vadd.f32 0.0, %v476
      %v478 = vpop.f32.mrb[0].mxu0
      %479 = vmatprep.mubr.f32.mxu0 %v372
      %480 = vmatmul.mubr.f32.gmra.mrb[0].mxu0 %v371
      %v481 = vpop.f32.mrb[0].mxu0
      %v482 = vadd.f32 0.0, %v481
      %v483 = vpop.f32.mrb[0].mxu0
      %484 = vmatprep.mubr.f32.mxu0 %v374
      %485 = vmatmul.mubr.f32.gmra.mrb[0].mxu0 %v373
      %v486 = vpop.f32.mrb[0].mxu0
      %v487 = vadd.f32 0.0, %v486
      %v488 = vpop.f32.mrb[0].mxu0
      %489 = vmatprep.mubr.f32.mxu0 %v376
      %490 = vmatmul.mubr.f32.gmra.mrb[0].mxu0 %v375
      %v491 = vpop.f32.mrb[0].mxu0
      %v492 = vadd.f32 0.0, %v491
      %v493 = vpop.f32.mrb[0].mxu0
      %494 = vmatprep.mubr.f32.mxu0 %v378
      %495 = vmatmul.mubr.f32.gmra.mrb[0].mxu0 %v377
      %v496 = vpop.f32.mrb[0].mxu0
      %v497 = vadd.f32 0.0, %v496
      %v498 = vpop.f32.mrb[0].mxu0
      %499 = vmatprep.mubr.f32.mxu0 %v380
      %500 = vmatmul.mubr.f32.gmra.mrb[0].mxu0 %v379
      %v501 = vpop.f32.mrb[0].mxu0
      %v502 = vadd.f32 0.0, %v501
      %v503 = vpop.f32.mrb[0].mxu0
      %504 = vmatprep.mubr.f32.mxu0 %v382
      %505 = vmatmul.mubr.f32.gmra.mrb[0].mxu0 %v381
      %v506 = vpop.f32.mrb[0].mxu0
      %v507 = vadd.f32 0.0, %v506
      %v508 = vpop.f32.mrb[0].mxu0
      %509 = vmatprep.mubr.f32.mxu0 %v384
      %510 = vmatmul.mubr.f32.gmra.mrb[0].mxu0 %v383
      %v511 = vpop.f32.mrb[0].mxu0
      %v512 = vadd.f32 0.0, %v511
      %v513 = vpop.f32.mrb[0].mxu0
      %514 = vmatprep.mubr.f32.mxu0 %v386
      %515 = vmatmul.mubr.f32.gmra.mrb[0].mxu0 %v385
      %v516 = vpop.f32.mrb[0].mxu0
      %v517 = vadd.f32 0.0, %v516
      %v518 = vpop.f32.mrb[0].mxu0
      %519 = vmatprep.mubr.f32.mxu0 %v388
      %520 = vmatmul.mubr.f32.gmra.mrb[0].mxu0 %v387
      %v521 = vpop.f32.mrb[0].mxu0
      %v522 = vadd.f32 0.0, %v521
      %v523 = vpop.f32.mrb[0].mxu0
      %524 = vmatprep.mubr.f32.mxu0 %v390
      %525 = vmatmul.mubr.f32.gmra.mrb[0].mxu0 %v389
      %v526 = vpop.f32.mrb[0].mxu0
      %v527 = vadd.f32 0.0, %v526
      %v528 = vpop.f32.mrb[0].mxu0
      %529 = vmatprep.mubr.f32.mxu0 %v392
      %530 = vmatmul.mubr.f32.gmra.mrb[0].mxu0 %v391
      %v531 = vpop.f32.mrb[0].mxu0
      %v532 = vadd.f32 0.0, %v531
      %v533 = vpop.f32.mrb[0].mxu0
      %534 = vmatprep.mubr.f32.mxu0 %v394
      %535 = vmatmul.mubr.f32.gmra.mrb[0].mxu0 %v393
      %v536 = vpop.f32.mrb[0].mxu0
      %v537 = vadd.f32 0.0, %v536
      %v538 = vpop.f32.mrb[0].mxu0
      %539 = vdwg.mxu0
      %v540 = vmax.f32 %v462, 0.0
      %v541 = vmax.f32 %v467, 0.0
      %v542 = vmax.f32 %v472, 0.0
      %v543 = vmax.f32 %v477, 0.0
      %v544 = vmax.f32 %v482, 0.0
      %v545 = vmax.f32 %v487, 0.0
      %v546 = vmax.f32 %v492, 0.0
      %v547 = vmax.f32 %v497, 0.0
      %v548 = vmax.f32 %v502, 0.0
      %v549 = vmax.f32 %v507, 0.0
      %v550 = vmax.f32 %v512, 0.0
      %v551 = vmax.f32 %v517, 0.0
      %v552 = vmax.f32 %v522, 0.0
      %v553 = vmax.f32 %v527, 0.0
      %v554 = vmax.f32 %v532, 0.0
      %v555 = vmax.f32 %v537, 0.0
      %v556 = vld [vmem:[%s2] sm:$0xff]
      %v557 = vld [vmem:[%s2 + $0x8] sm:$0xff]
      %v558 = vld [vmem:[%s2 + $0x10] sm:$0xff]
      %v559 = vld [vmem:[%s2 + $0x18] sm:$0xff]
      %v560 = vld [vmem:[%s2 + $0x20] sm:$0xff]
      %v561 = vld [vmem:[%s2 + $0x28] sm:$0xff]
      %v562 = vld [vmem:[%s2 + $0x30] sm:$0xff]
      %v563 = vld [vmem:[%s2 + $0x38] sm:$0xff]
      %v564 = vld [vmem:[%s2 + $0x40] sm:$0xff]
      %v565 = vld [vmem:[%s2 + $0x48] sm:$0xff]
      %v566 = vld [vmem:[%s2 + $0x50] sm:$0xff]
      %v567 = vld [vmem:[%s2 + $0x58] sm:$0xff]
      %v568 = vld [vmem:[%s2 + $0x60] sm:$0xff]
      %v569 = vld [vmem:[%s2 + $0x68] sm:$0xff]
      %v570 = vld [vmem:[%s2 + $0x70] sm:$0xff]
      %v571 = vld [vmem:[%s2 + $0x78] sm:$0xff]
      %v572 = vld [vmem:[%s2 + $0x80] sm:$0xff]
      %v573 = vld [vmem:[%s2 + $0x88] sm:$0xff]
      %v574 = vld [vmem:[%s2 + $0x90] sm:$0xff]
      %v575 = vld [vmem:[%s2 + $0x98] sm:$0xff]
      %v576 = vld [vmem:[%s2 + $0xa0] sm:$0xff]
      %v577 = vld [vmem:[%s2 + $0xa8] sm:$0xff]
      %v578 = vld [vmem:[%s2 + $0xb0] sm:$0xff]
      %v579 = vld [vmem:[%s2 + $0xb8] sm:$0xff]
      %v580 = vld [vmem:[%s2 + $0xc0] sm:$0xff]
      %v581 = vld [vmem:[%s2 + $0xc8] sm:$0xff]
      %v582 = vld [vmem:[%s2 + $0xd0] sm:$0xff]
      %v583 = vld [vmem:[%s2 + $0xd8] sm:$0xff]
      %v584 = vld [vmem:[%s2 + $0xe0] sm:$0xff]
      %v585 = vld [vmem:[%s2 + $0xe8] sm:$0xff]
      %v586 = vld [vmem:[%s2 + $0xf0] sm:$0xff]
      %v587 = vld [vmem:[%s2 + $0xf8] sm:$0xff]
      %588 = vmatprep.subr.mxu0 0.0
      %589 = vmatpush1.msra.mxu0 %v540
      %590 = vmatprep.subr.mxu0 0.0
      %591 = vmatpush1.msra.mxu0 %v541
      %592 = vmatprep.subr.mxu0 0.0
      %593 = vmatpush1.msra.mxu0 %v542
      %594 = vmatprep.subr.mxu0 0.0
      %595 = vmatpush1.msra.mxu0 %v543
      %596 = vmatprep.subr.mxu0 0.0
      %597 = vmatpush1.msra.mxu0 %v544
      %598 = vmatprep.subr.mxu0 0.0
      %599 = vmatpush1.msra.mxu0 %v545
      %600 = vmatprep.subr.mxu0 0.0
      %601 = vmatpush1.msra.mxu0 %v546
      %602 = vmatprep.subr.mxu0 0.0
      %603 = vmatpush1.msra.mxu0 %v547
      %604 = vmatprep.subr.mxu0 0.0
      %605 = vmatpush1.msra.mxu0 %v548
      %606 = vmatprep.subr.mxu0 0.0
      %607 = vmatpush1.msra.mxu0 %v549
      %608 = vmatprep.subr.mxu0 0.0
      %609 = vmatpush1.msra.mxu0 %v550
      %610 = vmatprep.subr.mxu0 0.0
      %611 = vmatpush1.msra.mxu0 %v551
      %612 = vmatprep.subr.mxu0 0.0
      %613 = vmatpush1.msra.mxu0 %v552
      %614 = vmatprep.subr.mxu0 0.0
      %615 = vmatpush1.msra.mxu0 %v553
      %616 = vmatprep.subr.mxu0 0.0
      %617 = vmatpush1.msra.mxu0 %v554
      %618 = vmatprep.subr.mxu0 0.0
      %619 = vmatpush1.msra.mxu0 %v555
      %620 = vmatprep.subr.mxu0 0.0
      %621 = vmatpush1.msra.mxu0 0.0
      %622 = vmatprep.subr.mxu0 0.0
      %623 = vmatpush1.msra.mxu0 0.0
      %624 = vmatprep.subr.mxu0 0.0
      %625 = vmatpush1.msra.mxu0 0.0
      %626 = vmatprep.subr.mxu0 0.0
      %627 = vmatpush1.msra.mxu0 0.0
      %628 = vmatprep.subr.mxu0 0.0
      %629 = vmatpush1.msra.mxu0 0.0
      %630 = vmatprep.subr.mxu0 0.0
      %631 = vmatpush1.msra.mxu0 0.0
      %632 = vmatprep.subr.mxu0 0.0
      %633 = vmatpush1.msra.mxu0 0.0
      %634 = vmatprep.subr.mxu0 0.0
      %635 = vmatpush1.msra.mxu0 0.0
      %636 = vmatprep.subr.mxu0 0.0
      %637 = vmatpush1.msra.mxu0 0.0
      %638 = vmatprep.subr.mxu0 0.0
      %639 = vmatpush1.msra.mxu0 0.0
      %640 = vmatprep.subr.mxu0 0.0
      %641 = vmatpush1.msra.mxu0 0.0
      %642 = vmatprep.subr.mxu0 0.0
      %643 = vmatpush1.msra.mxu0 0.0
      %644 = vmatprep.subr.mxu0 0.0
      %645 = vmatpush1.msra.mxu0 0.0
      %646 = vmatprep.subr.mxu0 0.0
      %647 = vmatpush1.msra.mxu0 0.0
      %648 = vmatprep.subr.mxu0 0.0
      %649 = vmatpush1.msra.mxu0 0.0
      %650 = vmatprep.subr.mxu0 0.0
      %651 = vmatpush1.msra.mxu0 0.0
      %652 = vmatprep.mubr.f32.mxu0 0.0
      %653 = vmatmul.mubr.f32.gmra.mrb[0].mxu0 %v556
      %v654 = vpop.f32.mrb[0].mxu0
      %v655 = vadd.f32 0.0, %v654
      %v656 = vpop.f32.mrb[0].mxu0
      %657 = vmatprep.mubr.f32.mxu0 0.0
      %658 = vmatmul.mubr.f32.gmra.mrb[0].mxu0 %v557
      %v659 = vpop.f32.mrb[0].mxu0
      %v660 = vadd.f32 0.0, %v659
      %v661 = vpop.f32.mrb[0].mxu0
      %662 = vmatprep.mubr.f32.mxu0 0.0
      %663 = vmatmul.mubr.f32.gmra.mrb[0].mxu0 %v558
      %v664 = vpop.f32.mrb[0].mxu0
      %v665 = vadd.f32 0.0, %v664
      %v666 = vpop.f32.mrb[0].mxu0
      %667 = vmatprep.mubr.f32.mxu0 0.0
      %668 = vmatmul.mubr.f32.gmra.mrb[0].mxu0 %v559
      %v669 = vpop.f32.mrb[0].mxu0
      %v670 = vadd.f32 0.0, %v669
      %v671 = vpop.f32.mrb[0].mxu0
      %672 = vmatprep.mubr.f32.mxu0 0.0
      %673 = vmatmul.mubr.f32.gmra.mrb[0].mxu0 %v560
      %v674 = vpop.f32.mrb[0].mxu0
      %v675 = vadd.f32 0.0, %v674
      %v676 = vpop.f32.mrb[0].mxu0
      %677 = vmatprep.mubr.f32.mxu0 0.0
      %678 = vmatmul.mubr.f32.gmra.mrb[0].mxu0 %v561
      %v679 = vpop.f32.mrb[0].mxu0
      %v680 = vadd.f32 0.0, %v679
      %v681 = vpop.f32.mrb[0].mxu0
      %682 = vmatprep.mubr.f32.mxu0 0.0
      %683 = vmatmul.mubr.f32.gmra.mrb[0].mxu0 %v562
      %v684 = vpop.f32.mrb[0].mxu0
      %v685 = vadd.f32 0.0, %v684
      %v686 = vpop.f32.mrb[0].mxu0
      %687 = vmatprep.mubr.f32.mxu0 0.0
      %688 = vmatmul.mubr.f32.gmra.mrb[0].mxu0 %v563
      %v689 = vpop.f32.mrb[0].mxu0
      %v690 = vadd.f32 0.0, %v689
      %v691 = vpop.f32.mrb[0].mxu0
      %692 = vmatprep.mubr.f32.mxu0 0.0
      %693 = vmatmul.mubr.f32.gmra.mrb[0].mxu0 %v564
      %v694 = vpop.f32.mrb[0].mxu0
      %v695 = vadd.f32 0.0, %v694
      %v696 = vpop.f32.mrb[0].mxu0
      %697 = vmatprep.mubr.f32.mxu0 0.0
      %698 = vmatmul.mubr.f32.gmra.mrb[0].mxu0 %v565
      %v699 = vpop.f32.mrb[0].mxu0
      %v700 = vadd.f32 0.0, %v699
      %v701 = vpop.f32.mrb[0].mxu0
      %702 = vmatprep.mubr.f32.mxu0 0.0
      %703 = vmatmul.mubr.f32.gmra.mrb[0].mxu0 %v566
      %v704 = vpop.f32.mrb[0].mxu0
      %v705 = vadd.f32 0.0, %v704
      %v706 = vpop.f32.mrb[0].mxu0
      %707 = vmatprep.mubr.f32.mxu0 0.0
      %708 = vmatmul.mubr.f32.gmra.mrb[0].mxu0 %v567
      %v709 = vpop.f32.mrb[0].mxu0
      %v710 = vadd.f32 0.0, %v709
      %v711 = vpop.f32.mrb[0].mxu0
      %712 = vmatprep.mubr.f32.mxu0 0.0
      %713 = vmatmul.mubr.f32.gmra.mrb[0].mxu0 %v568
      %v714 = vpop.f32.mrb[0].mxu0
      %v715 = vadd.f32 0.0, %v714
      %v716 = vpop.f32.mrb[0].mxu0
      %717 = vmatprep.mubr.f32.mxu0 0.0
      %718 = vmatmul.mubr.f32.gmra.mrb[0].mxu0 %v569
      %v719 = vpop.f32.mrb[0].mxu0
      %v720 = vadd.f32 0.0, %v719
      %v721 = vpop.f32.mrb[0].mxu0
      %722 = vmatprep.mubr.f32.mxu0 0.0
      %723 = vmatmul.mubr.f32.gmra.mrb[0].mxu0 %v570
      %v724 = vpop.f32.mrb[0].mxu0
      %v725 = vadd.f32 0.0, %v724
      %v726 = vpop.f32.mrb[0].mxu0
      %727 = vmatprep.mubr.f32.mxu0 0.0
      %728 = vmatmul.mubr.f32.gmra.mrb[0].mxu0 %v571
      %v729 = vpop.f32.mrb[0].mxu0
      %v730 = vadd.f32 0.0, %v729
      %v731 = vpop.f32.mrb[0].mxu0
      %732 = vmatprep.mubr.f32.mxu0 0.0
      %733 = vmatmul.mubr.f32.gmra.mrb[0].mxu0 %v572
      %v734 = vpop.f32.mrb[0].mxu0
      %v735 = vadd.f32 0.0, %v734
      %v736 = vpop.f32.mrb[0].mxu0
      %737 = vmatprep.mubr.f32.mxu0 0.0
      %738 = vmatmul.mubr.f32.gmra.mrb[0].mxu0 %v573
      %v739 = vpop.f32.mrb[0].mxu0
      %v740 = vadd.f32 0.0, %v739
      %v741 = vpop.f32.mrb[0].mxu0
      %742 = vmatprep.mubr.f32.mxu0 0.0
      %743 = vmatmul.mubr.f32.gmra.mrb[0].mxu0 %v574
      %v744 = vpop.f32.mrb[0].mxu0
      %v745 = vadd.f32 0.0, %v744
      %v746 = vpop.f32.mrb[0].mxu0
      %747 = vmatprep.mubr.f32.mxu0 0.0
      %748 = vmatmul.mubr.f32.gmra.mrb[0].mxu0 %v575
      %v749 = vpop.f32.mrb[0].mxu0
      %v750 = vadd.f32 0.0, %v749
      %v751 = vpop.f32.mrb[0].mxu0
      %752 = vmatprep.mubr.f32.mxu0 0.0
      %753 = vmatmul.mubr.f32.gmra.mrb[0].mxu0 %v576
      %v754 = vpop.f32.mrb[0].mxu0
      %v755 = vadd.f32 0.0, %v754
      %v756 = vpop.f32.mrb[0].mxu0
      %757 = vmatprep.mubr.f32.mxu0 0.0
      %758 = vmatmul.mubr.f32.gmra.mrb[0].mxu0 %v577
      %v759 = vpop.f32.mrb[0].mxu0
      %v760 = vadd.f32 0.0, %v759
      %v761 = vpop.f32.mrb[0].mxu0
      %762 = vmatprep.mubr.f32.mxu0 0.0
      %763 = vmatmul.mubr.f32.gmra.mrb[0].mxu0 %v578
      %v764 = vpop.f32.mrb[0].mxu0
      %v765 = vadd.f32 0.0, %v764
      %v766 = vpop.f32.mrb[0].mxu0
      %767 = vmatprep.mubr.f32.mxu0 0.0
      %768 = vmatmul.mubr.f32.gmra.mrb[0].mxu0 %v579
      %v769 = vpop.f32.mrb[0].mxu0
      %v770 = vadd.f32 0.0, %v769
      %v771 = vpop.f32.mrb[0].mxu0
      %772 = vmatprep.mubr.f32.mxu0 0.0
      %773 = vmatmul.mubr.f32.gmra.mrb[0].mxu0 %v580
      %v774 = vpop.f32.mrb[0].mxu0
      %v775 = vadd.f32 0.0, %v774
      %v776 = vpop.f32.mrb[0].mxu0
      %777 = vmatprep.mubr.f32.mxu0 0.0
      %778 = vmatmul.mubr.f32.gmra.mrb[0].mxu0 %v581
      %v779 = vpop.f32.mrb[0].mxu0
      %v780 = vadd.f32 0.0, %v779
      %v781 = vpop.f32.mrb[0].mxu0
      %782 = vmatprep.mubr.f32.mxu0 0.0
      %783 = vmatmul.mubr.f32.gmra.mrb[0].mxu0 %v582
      %v784 = vpop.f32.mrb[0].mxu0
      %v785 = vadd.f32 0.0, %v784
      %v786 = vpop.f32.mrb[0].mxu0
      %787 = vmatprep.mubr.f32.mxu0 0.0
      %788 = vmatmul.mubr.f32.gmra.mrb[0].mxu0 %v583
      %v789 = vpop.f32.mrb[0].mxu0
      %v790 = vadd.f32 0.0, %v789
      %v791 = vpop.f32.mrb[0].mxu0
      %792 = vmatprep.mubr.f32.mxu0 0.0
      %793 = vmatmul.mubr.f32.gmra.mrb[0].mxu0 %v584
      %v794 = vpop.f32.mrb[0].mxu0
      %v795 = vadd.f32 0.0, %v794
      %v796 = vpop.f32.mrb[0].mxu0
      %797 = vmatprep.mubr.f32.mxu0 0.0
      %798 = vmatmul.mubr.f32.gmra.mrb[0].mxu0 %v585
      %v799 = vpop.f32.mrb[0].mxu0
      %v800 = vadd.f32 0.0, %v799
      %v801 = vpop.f32.mrb[0].mxu0
      %802 = vmatprep.mubr.f32.mxu0 0.0
      %803 = vmatmul.mubr.f32.gmra.mrb[0].mxu0 %v586
      %v804 = vpop.f32.mrb[0].mxu0
      %v805 = vadd.f32 0.0, %v804
      %v806 = vpop.f32.mrb[0].mxu0
      %807 = vmatprep.mubr.f32.mxu0 0.0
      %808 = vmatmul.mubr.f32.gmra.mrb[0].mxu0 %v587
      %v809 = vpop.f32.mrb[0].mxu0
      %v810 = vadd.f32 0.0, %v809
      %v811 = vpop.f32.mrb[0].mxu0
      %812 = vdwg.mxu0
      %v813 = vxor.u32 %v655, 2147483648
      %v814 = vxor.u32 %v660, 2147483648
      %v815 = vxor.u32 %v665, 2147483648
      %v816 = vxor.u32 %v670, 2147483648
      %v817 = vxor.u32 %v675, 2147483648
      %v818 = vxor.u32 %v680, 2147483648
      %v819 = vxor.u32 %v685, 2147483648
      %v820 = vxor.u32 %v690, 2147483648
      %v821 = vxor.u32 %v695, 2147483648
      %v822 = vxor.u32 %v700, 2147483648
      %v823 = vxor.u32 %v705, 2147483648
      %v824 = vxor.u32 %v710, 2147483648
      %v825 = vxor.u32 %v715, 2147483648
      %v826 = vxor.u32 %v720, 2147483648
      %v827 = vxor.u32 %v725, 2147483648
      %v828 = vxor.u32 %v730, 2147483648
      %v829 = vxor.u32 %v735, 2147483648
      %v830 = vxor.u32 %v740, 2147483648
      %v831 = vxor.u32 %v745, 2147483648
      %v832 = vxor.u32 %v750, 2147483648
      %v833 = vxor.u32 %v755, 2147483648
      %v834 = vxor.u32 %v760, 2147483648
      %v835 = vxor.u32 %v765, 2147483648
      %v836 = vxor.u32 %v770, 2147483648
      %v837 = vxor.u32 %v775, 2147483648
      %v838 = vxor.u32 %v780, 2147483648
      %v839 = vxor.u32 %v785, 2147483648
      %v840 = vxor.u32 %v790, 2147483648
      %v841 = vxor.u32 %v795, 2147483648
      %v842 = vxor.u32 %v800, 2147483648
      %v843 = vxor.u32 %v805, 2147483648
      %v844 = vxor.u32 %v810, 2147483648
      %v845 = vmul.f32 %v813, 1.442695
      %v846 = vpow.pop %v845
      %v847 = vmul.f32 %v814, 1.442695
      %v848 = vpow.pop %v847
      %v849 = vmul.f32 %v815, 1.442695
      %v850 = vpow.pop %v849
      %v851 = vmul.f32 %v816, 1.442695
      %v852 = vpow.pop %v851
      %v853 = vmul.f32 %v817, 1.442695
      %v854 = vpow.pop %v853
      %v855 = vmul.f32 %v818, 1.442695
      %v856 = vpow.pop %v855
      %v857 = vmul.f32 %v819, 1.442695
      %v858 = vpow.pop %v857
      %v859 = vmul.f32 %v820, 1.442695
      %v860 = vpow.pop %v859
      %v861 = vmul.f32 %v821, 1.442695
      %v862 = vpow.pop %v861
      %v863 = vmul.f32 %v822, 1.442695
      %v864 = vpow.pop %v863
      %v865 = vmul.f32 %v823, 1.442695
      %v866 = vpow.pop %v865
      %v867 = vmul.f32 %v824, 1.442695
      %v868 = vpow.pop %v867
      %v869 = vmul.f32 %v825, 1.442695
      %v870 = vpow.pop %v869
      %v871 = vmul.f32 %v826, 1.442695
      %v872 = vpow.pop %v871
      %v873 = vmul.f32 %v827, 1.442695
      %v874 = vpow.pop %v873
      %v875 = vmul.f32 %v828, 1.442695
      %v876 = vpow.pop %v875
      %v877 = vmul.f32 %v829, 1.442695
      %v878 = vpow.pop %v877
      %v879 = vmul.f32 %v830, 1.442695
      %v880 = vpow.pop %v879
      %v881 = vmul.f32 %v831, 1.442695
      %v882 = vpow.pop %v881
      %v883 = vmul.f32 %v832, 1.442695
      %v884 = vpow.pop %v883
      %v885 = vmul.f32 %v833, 1.442695
      %v886 = vpow.pop %v885
      %v887 = vmul.f32 %v834, 1.442695
      %v888 = vpow.pop %v887
      %v889 = vmul.f32 %v835, 1.442695
      %v890 = vpow.pop %v889
      %v891 = vmul.f32 %v836, 1.442695
      %v892 = vpow.pop %v891
      %v893 = vmul.f32 %v837, 1.442695
      %v894 = vpow.pop %v893
      %v895 = vmul.f32 %v838, 1.442695
      %v896 = vpow.pop %v895
      %v897 = vmul.f32 %v839, 1.442695
      %v898 = vpow.pop %v897
      %v899 = vmul.f32 %v840, 1.442695
      %v900 = vpow.pop %v899
      %v901 = vmul.f32 %v841, 1.442695
      %v902 = vpow.pop %v901
      %v903 = vmul.f32 %v842, 1.442695
      %v904 = vpow.pop %v903
      %v905 = vmul.f32 %v843, 1.442695
      %v906 = vpow.pop %v905
      %v907 = vmul.f32 %v844, 1.442695
      %v908 = vpow.pop %v907
      %v909 = vadd.f32 %v846, 1.0
      %v910 = vadd.f32 %v848, 1.0
      %v911 = vadd.f32 %v850, 1.0
      %v912 = vadd.f32 %v852, 1.0
      %v913 = vadd.f32 %v854, 1.0
      %v914 = vadd.f32 %v856, 1.0
      %v915 = vadd.f32 %v858, 1.0
      %v916 = vadd.f32 %v860, 1.0
      %v917 = vadd.f32 %v862, 1.0
      %v918 = vadd.f32 %v864, 1.0
      %v919 = vadd.f32 %v866, 1.0
      %v920 = vadd.f32 %v868, 1.0
      %v921 = vadd.f32 %v870, 1.0
      %v922 = vadd.f32 %v872, 1.0
      %v923 = vadd.f32 %v874, 1.0
      %v924 = vadd.f32 %v876, 1.0
      %v925 = vadd.f32 %v878, 1.0
      %v926 = vadd.f32 %v880, 1.0
      %v927 = vadd.f32 %v882, 1.0
      %v928 = vadd.f32 %v884, 1.0
      %v929 = vadd.f32 %v886, 1.0
      %v930 = vadd.f32 %v888, 1.0
      %v931 = vadd.f32 %v890, 1.0
      %v932 = vadd.f32 %v892, 1.0
      %v933 = vadd.f32 %v894, 1.0
      %v934 = vadd.f32 %v896, 1.0
      %v935 = vadd.f32 %v898, 1.0
      %v936 = vadd.f32 %v900, 1.0
      %v937 = vadd.f32 %v902, 1.0
      %v938 = vadd.f32 %v904, 1.0
      %v939 = vadd.f32 %v906, 1.0
      %v940 = vadd.f32 %v908, 1.0
      %v941 = vrcp.pop %v909
      %v942 = vmul.f32 1.0, %v941
      %v943 = vrcp.pop %v910
      %v944 = vmul.f32 1.0, %v943
      %v945 = vrcp.pop %v911
      %v946 = vmul.f32 1.0, %v945
      %v947 = vrcp.pop %v912
      %v948 = vmul.f32 1.0, %v947
      %v949 = vrcp.pop %v913
      %v950 = vmul.f32 1.0, %v949
      %v951 = vrcp.pop %v914
      %v952 = vmul.f32 1.0, %v951
      %v953 = vrcp.pop %v915
      %v954 = vmul.f32 1.0, %v953
      %v955 = vrcp.pop %v916
      %v956 = vmul.f32 1.0, %v955
      %v957 = vrcp.pop %v917
      %v958 = vmul.f32 1.0, %v957
      %v959 = vrcp.pop %v918
      %v960 = vmul.f32 1.0, %v959
      %v961 = vrcp.pop %v919
      %v962 = vmul.f32 1.0, %v961
      %v963 = vrcp.pop %v920
      %v964 = vmul.f32 1.0, %v963
      %v965 = vrcp.pop %v921
      %v966 = vmul.f32 1.0, %v965
      %v967 = vrcp.pop %v922
      %v968 = vmul.f32 1.0, %v967
      %v969 = vrcp.pop %v923
      %v970 = vmul.f32 1.0, %v969
      %v971 = vrcp.pop %v924
      %v972 = vmul.f32 1.0, %v971
      %v973 = vrcp.pop %v925
      %v974 = vmul.f32 1.0, %v973
      %v975 = vrcp.pop %v926
      %v976 = vmul.f32 1.0, %v975
      %v977 = vrcp.pop %v927
      %v978 = vmul.f32 1.0, %v977
      %v979 = vrcp.pop %v928
      %v980 = vmul.f32 1.0, %v979
      %v981 = vrcp.pop %v929
      %v982 = vmul.f32 1.0, %v981
      %v983 = vrcp.pop %v930
      %v984 = vmul.f32 1.0, %v983
      %v985 = vrcp.pop %v931
      %v986 = vmul.f32 1.0, %v985
      %v987 = vrcp.pop %v932
      %v988 = vmul.f32 1.0, %v987
      %v989 = vrcp.pop %v933
      %v990 = vmul.f32 1.0, %v989
      %v991 = vrcp.pop %v934
      %v992 = vmul.f32 1.0, %v991
      %v993 = vrcp.pop %v935
      %v994 = vmul.f32 1.0, %v993
      %v995 = vrcp.pop %v936
      %v996 = vmul.f32 1.0, %v995
      %v997 = vrcp.pop %v937
      %v998 = vmul.f32 1.0, %v997
      %v999 = vrcp.pop %v938
      %v1000 = vmul.f32 1.0, %v999
      %v1001 = vrcp.pop %v939
      %v1002 = vmul.f32 1.0, %v1001
      %v1003 = vrcp.pop %v940
      %v1004 = vmul.f32 1.0, %v1003
      %1006 = vset.pattern.permute.xlu0 0
      %1007 = vperm.xlu0 %1006, %v942
      %v1008 = vpop.permute.xlu0 %1007
      %1011 = vset.pattern.permute.xlu0 0
      %1012 = vperm.xlu0 %1011, %v944
      %v1013 = vpop.permute.xlu0 %1012
      %1016 = vset.pattern.permute.xlu0 0
      %1017 = vperm.xlu0 %1016, %v946
      %v1018 = vpop.permute.xlu0 %1017
      %1021 = vset.pattern.permute.xlu0 0
      %1022 = vperm.xlu0 %1021, %v948
      %v1023 = vpop.permute.xlu0 %1022
      %1026 = vset.pattern.permute.xlu0 0
      %1027 = vperm.xlu0 %1026, %v950
      %v1028 = vpop.permute.xlu0 %1027
      %1031 = vset.pattern.permute.xlu0 0
      %1032 = vperm.xlu0 %1031, %v952
      %v1033 = vpop.permute.xlu0 %1032
      %1036 = vset.pattern.permute.xlu0 0
      %1037 = vperm.xlu0 %1036, %v954
      %v1038 = vpop.permute.xlu0 %1037
      %1041 = vset.pattern.permute.xlu0 0
      %1042 = vperm.xlu0 %1041, %v956
      %v1043 = vpop.permute.xlu0 %1042
      %1046 = vset.pattern.permute.xlu0 0
      %1047 = vperm.xlu0 %1046, %v958
      %v1048 = vpop.permute.xlu0 %1047
      %1051 = vset.pattern.permute.xlu0 0
      %1052 = vperm.xlu0 %1051, %v960
      %v1053 = vpop.permute.xlu0 %1052
      %1056 = vset.pattern.permute.xlu0 0
      %1057 = vperm.xlu0 %1056, %v962
      %v1058 = vpop.permute.xlu0 %1057
      %1061 = vset.pattern.permute.xlu0 0
      %1062 = vperm.xlu0 %1061, %v964
      %v1063 = vpop.permute.xlu0 %1062
      %1066 = vset.pattern.permute.xlu0 0
      %1067 = vperm.xlu0 %1066, %v966
      %v1068 = vpop.permute.xlu0 %1067
      %1071 = vset.pattern.permute.xlu0 0
      %1072 = vperm.xlu0 %1071, %v968
      %v1073 = vpop.permute.xlu0 %1072
      %1076 = vset.pattern.permute.xlu0 0
      %1077 = vperm.xlu0 %1076, %v970
      %v1078 = vpop.permute.xlu0 %1077
      %1081 = vset.pattern.permute.xlu0 0
      %1082 = vperm.xlu0 %1081, %v972
      %v1083 = vpop.permute.xlu0 %1082
      %1086 = vset.pattern.permute.xlu0 0
      %1087 = vperm.xlu0 %1086, %v974
      %v1088 = vpop.permute.xlu0 %1087
      %1091 = vset.pattern.permute.xlu0 0
      %1092 = vperm.xlu0 %1091, %v976
      %v1093 = vpop.permute.xlu0 %1092
      %1096 = vset.pattern.permute.xlu0 0
      %1097 = vperm.xlu0 %1096, %v978
      %v1098 = vpop.permute.xlu0 %1097
      %1101 = vset.pattern.permute.xlu0 0
      %1102 = vperm.xlu0 %1101, %v980
      %v1103 = vpop.permute.xlu0 %1102
      %1106 = vset.pattern.permute.xlu0 0
      %1107 = vperm.xlu0 %1106, %v982
      %v1108 = vpop.permute.xlu0 %1107
      %1111 = vset.pattern.permute.xlu0 0
      %1112 = vperm.xlu0 %1111, %v984
      %v1113 = vpop.permute.xlu0 %1112
      %1116 = vset.pattern.permute.xlu0 0
      %1117 = vperm.xlu0 %1116, %v986
      %v1118 = vpop.permute.xlu0 %1117
      %1121 = vset.pattern.permute.xlu0 0
      %1122 = vperm.xlu0 %1121, %v988
      %v1123 = vpop.permute.xlu0 %1122
      %1126 = vset.pattern.permute.xlu0 0
      %1127 = vperm.xlu0 %1126, %v990
      %v1128 = vpop.permute.xlu0 %1127
      %1131 = vset.pattern.permute.xlu0 0
      %1132 = vperm.xlu0 %1131, %v992
      %v1133 = vpop.permute.xlu0 %1132
      %1136 = vset.pattern.permute.xlu0 0
      %1137 = vperm.xlu0 %1136, %v994
      %v1138 = vpop.permute.xlu0 %1137
      %1141 = vset.pattern.permute.xlu0 0
      %1142 = vperm.xlu0 %1141, %v996
      %v1143 = vpop.permute.xlu0 %1142
      %1146 = vset.pattern.permute.xlu0 0
      %1147 = vperm.xlu0 %1146, %v998
      %v1148 = vpop.permute.xlu0 %1147
      %1151 = vset.pattern.permute.xlu0 0
      %1152 = vperm.xlu0 %1151, %v1000
      %v1153 = vpop.permute.xlu0 %1152
      %1156 = vset.pattern.permute.xlu0 0
      %1157 = vperm.xlu0 %1156, %v1002
      %v1158 = vpop.permute.xlu0 %1157
      %1161 = vset.pattern.permute.xlu0 0
      %1162 = vperm.xlu0 %1161, %v1004
      %v1163 = vpop.permute.xlu0 %1162
      %v1165 = vmul.f32 %v171, %v1008
      %v1166 = vmul.f32 %v172, %v1008
      %v1167 = vmul.f32 %v173, %v1013
      %v1168 = vmul.f32 %v174, %v1013
      %v1169 = vmul.f32 %v175, %v1018
      %v1170 = vmul.f32 %v176, %v1018
      %v1171 = vmul.f32 %v177, %v1023
      %v1172 = vmul.f32 %v178, %v1023
      %v1173 = vmul.f32 %v179, %v1028
      %v1174 = vmul.f32 %v180, %v1028
      %v1175 = vmul.f32 %v181, %v1033
      %v1176 = vmul.f32 %v182, %v1033
      %v1177 = vmul.f32 %v183, %v1038
      %v1178 = vmul.f32 %v184, %v1038
      %v1179 = vmul.f32 %v185, %v1043
      %v1180 = vmul.f32 %v186, %v1043
      %v1181 = vmul.f32 %v187, %v1048
      %v1182 = vmul.f32 %v188, %v1048
      %v1183 = vmul.f32 %v189, %v1053
      %v1184 = vmul.f32 %v190, %v1053
      %v1185 = vmul.f32 %v191, %v1058
      %v1186 = vmul.f32 %v192, %v1058
      %v1187 = vmul.f32 %v193, %v1063
      %v1188 = vmul.f32 %v194, %v1063
      %v1189 = vmul.f32 %v195, %v1068
      %v1190 = vmul.f32 %v196, %v1068
      %v1191 = vmul.f32 %v197, %v1073
      %v1192 = vmul.f32 %v198, %v1073
      %v1193 = vmul.f32 %v199, %v1078
      %v1194 = vmul.f32 %v200, %v1078
      %v1195 = vmul.f32 %v201, %v1083
      %v1196 = vmul.f32 %v202, %v1083
      %v1197 = vmul.f32 %v203, %v1088
      %v1198 = vmul.f32 %v204, %v1088
      %v1199 = vmul.f32 %v205, %v1093
      %v1200 = vmul.f32 %v206, %v1093
      %v1201 = vmul.f32 %v207, %v1098
      %v1202 = vmul.f32 %v208, %v1098
      %v1203 = vmul.f32 %v209, %v1103
      %v1204 = vmul.f32 %v210, %v1103
      %v1205 = vmul.f32 %v211, %v1108
      %v1206 = vmul.f32 %v212, %v1108
      %v1207 = vmul.f32 %v213, %v1113
      %v1208 = vmul.f32 %v214, %v1113
      %v1209 = vmul.f32 %v215, %v1118
      %v1210 = vmul.f32 %v216, %v1118
      %v1211 = vmul.f32 %v217, %v1123
      %v1212 = vmul.f32 %v218, %v1123
      %v1213 = vmul.f32 %v219, %v1128
      %v1214 = vmul.f32 %v220, %v1128
      %v1215 = vmul.f32 %v221, %v1133
      %v1216 = vmul.f32 %v222, %v1133
      %v1217 = vmul.f32 %v223, %v1138
      %v1218 = vmul.f32 %v224, %v1138
      %v1219 = vmul.f32 %v225, %v1143
      %v1220 = vmul.f32 %v226, %v1143
      %v1221 = vmul.f32 %v227, %v1148
      %v1222 = vmul.f32 %v228, %v1148
      %v1223 = vmul.f32 %v229, %v1153
      %v1224 = vmul.f32 %v230, %v1153
      %v1225 = vmul.f32 %v231, %v1158
      %v1226 = vmul.f32 %v232, %v1158
      %v1227 = vmul.f32 %v233, %v1163
      %v1228 = vmul.f32 %v234, %v1163
      %1229 = vst [vmem:[%s170] sm:$0xff] %v1165
      %1230 = vst [vmem:[%s170 + $0x8] sm:$0xff] %v1166
      %1231 = vst [vmem:[%s170 + $0x10] sm:$0xff] %v1167
      %1232 = vst [vmem:[%s170 + $0x18] sm:$0xff] %v1168
      %1233 = vst [vmem:[%s170 + $0x20] sm:$0xff] %v1169
      %1234 = vst [vmem:[%s170 + $0x28] sm:$0xff] %v1170
      %1235 = vst [vmem:[%s170 + $0x30] sm:$0xff] %v1171
      %1236 = vst [vmem:[%s170 + $0x38] sm:$0xff] %v1172
      %1237 = vst [vmem:[%s170 + $0x40] sm:$0xff] %v1173
      %1238 = vst [vmem:[%s170 + $0x48] sm:$0xff] %v1174
      %1239 = vst [vmem:[%s170 + $0x50] sm:$0xff] %v1175
      %1240 = vst [vmem:[%s170 + $0x58] sm:$0xff] %v1176
      %1241 = vst [vmem:[%s170 + $0x60] sm:$0xff] %v1177
      %1242 = vst [vmem:[%s170 + $0x68] sm:$0xff] %v1178
      %1243 = vst [vmem:[%s170 + $0x70] sm:$0xff] %v1179
      %1244 = vst [vmem:[%s170 + $0x78] sm:$0xff] %v1180
      %1245 = vst [vmem:[%s170 + $0x80] sm:$0xff] %v1181
      %1246 = vst [vmem:[%s170 + $0x88] sm:$0xff] %v1182
      %1247 = vst [vmem:[%s170 + $0x90] sm:$0xff] %v1183
      %1248 = vst [vmem:[%s170 + $0x98] sm:$0xff] %v1184
      %1249 = vst [vmem:[%s170 + $0xa0] sm:$0xff] %v1185
      %1250 = vst [vmem:[%s170 + $0xa8] sm:$0xff] %v1186
      %1251 = vst [vmem:[%s170 + $0xb0] sm:$0xff] %v1187
      %1252 = vst [vmem:[%s170 + $0xb8] sm:$0xff] %v1188
      %1253 = vst [vmem:[%s170 + $0xc0] sm:$0xff] %v1189
      %1254 = vst [vmem:[%s170 + $0xc8] sm:$0xff] %v1190
      %1255 = vst [vmem:[%s170 + $0xd0] sm:$0xff] %v1191
      %1256 = vst [vmem:[%s170 + $0xd8] sm:$0xff] %v1192
      %1257 = vst [vmem:[%s170 + $0xe0] sm:$0xff] %v1193
      %1258 = vst [vmem:[%s170 + $0xe8] sm:$0xff] %v1194
      %1259 = vst [vmem:[%s170 + $0xf0] sm:$0xff] %v1195
      %1260 = vst [vmem:[%s170 + $0xf8] sm:$0xff] %v1196
      %1261 = vst [vmem:[%s170 + $0x100] sm:$0xff] %v1197
      %1262 = vst [vmem:[%s170 + $0x108] sm:$0xff] %v1198
      %1263 = vst [vmem:[%s170 + $0x110] sm:$0xff] %v1199
      %1264 = vst [vmem:[%s170 + $0x118] sm:$0xff] %v1200
      %1265 = vst [vmem:[%s170 + $0x120] sm:$0xff] %v1201
      %1266 = vst [vmem:[%s170 + $0x128] sm:$0xff] %v1202
      %1267 = vst [vmem:[%s170 + $0x130] sm:$0xff] %v1203
      %1268 = vst [vmem:[%s170 + $0x138] sm:$0xff] %v1204
      %1269 = vst [vmem:[%s170 + $0x140] sm:$0xff] %v1205
      %1270 = vst [vmem:[%s170 + $0x148] sm:$0xff] %v1206
      %1271 = vst [vmem:[%s170 + $0x150] sm:$0xff] %v1207
      %1272 = vst [vmem:[%s170 + $0x158] sm:$0xff] %v1208
      %1273 = vst [vmem:[%s170 + $0x160] sm:$0xff] %v1209
      %1274 = vst [vmem:[%s170 + $0x168] sm:$0xff] %v1210
      %1275 = vst [vmem:[%s170 + $0x170] sm:$0xff] %v1211
      %1276 = vst [vmem:[%s170 + $0x178] sm:$0xff] %v1212
      %1277 = vst [vmem:[%s170 + $0x180] sm:$0xff] %v1213
      %1278 = vst [vmem:[%s170 + $0x188] sm:$0xff] %v1214
      %1279 = vst [vmem:[%s170 + $0x190] sm:$0xff] %v1215
      %1280 = vst [vmem:[%s170 + $0x198] sm:$0xff] %v1216
      %1281 = vst [vmem:[%s170 + $0x1a0] sm:$0xff] %v1217
      %1282 = vst [vmem:[%s170 + $0x1a8] sm:$0xff] %v1218
      %1283 = vst [vmem:[%s170 + $0x1b0] sm:$0xff] %v1219
      %1284 = vst [vmem:[%s170 + $0x1b8] sm:$0xff] %v1220
      %1285 = vst [vmem:[%s170 + $0x1c0] sm:$0xff] %v1221
      %1286 = vst [vmem:[%s170 + $0x1c8] sm:$0xff] %v1222
      %1287 = vst [vmem:[%s170 + $0x1d0] sm:$0xff] %v1223
      %1288 = vst [vmem:[%s170 + $0x1d8] sm:$0xff] %v1224
      %1289 = vst [vmem:[%s170 + $0x1e0] sm:$0xff] %v1225
      %1290 = vst [vmem:[%s170 + $0x1e8] sm:$0xff] %v1226
      %1291 = vst [vmem:[%s170 + $0x1f0] sm:$0xff] %v1227
      %1292 = vst [vmem:[%s170 + $0x1f8] sm:$0xff] %v1228
      %p1293 = scmp.lt.s32.totalorder %s14, 1
      %s1294 = scalar_select %p1293, %s14, 1
      %s1295 = smul.addr %s1294, 64
      %s1296 = smul.addr %s1295, 8
      %s1297 = scalar_lea.vmem %s3, %s1296
      // Predicated region
      $region33: #{se_layer_forward.1} parent=31 // pred_check
        %p1298 = pneg %p100
      $region34: #{se_layer_forward.1} parent=31 // pred_check_branch
        %1300 = sbr.rel (%p1298) target = $region36
      $region35: #{se_layer_forward.1} parent=31 // pred_region
        _
      $region36: #{se_layer_forward.1} parent=31 // pred_fallthru
        _
    $region32: #{se_layer_forward.1} parent=5 // pred_fallthru
      _
    %p1301 = scmp.le.s32.totalorder 2, %s9
    // Predicated region
    $region37: #{se_layer_forward.1} parent=5 // pred_check
      %p1302 = pneg %p1301
    $region38: #{se_layer_forward.1} parent=5 // pred_check_branch
      %1304 = sbr.rel (%p1302) target = $region40
    $region39: #{se_layer_forward.1} parent=5 // pred_region
      %s1305 = ssub.s32 %s9, 2
      // Predicated region
      $region41: #{se_layer_forward.1} parent=39 // pred_check
        %p1306 = pneg %p106
      $region42: #{se_layer_forward.1} parent=39 // pred_check_branch
        %1308 = sbr.rel (%p1306) target = $region44
      $region43: #{se_layer_forward.1} parent=39 // pred_region
        %p1309 = scmp.lt.s32.totalorder %s15, 1
        %s1310 = scalar_select %p1309, %s15, 1
        %s1311 = smul.addr %s1310, 64
        %s1312 = smul.addr %s1311, 8
        %s1313 = scalar_lea.vmem %s3, %s1312
      $region44: #{se_layer_forward.1} parent=39 // pred_fallthru
        _
    $region40: #{se_layer_forward.1} parent=5 // pred_fallthru
      _
  $region6: #{se_layer_forward.1} parent=0 // loop_footer
    %s13 = sadd.s32 1, %s9
  $region7: #{se_layer_forward.1} parent=0 // loop_footer_branch
    %8 = sbr.rel target = $region3
  $region8: #{se_layer_forward.1} parent=0 // loop_exit
    _

</llo_original>
